<compile_context>
chip_gen: v5e
topology: v5e:2x2
jax: 0.10.0
libtpu: 0.0.40
codegen_flags: <defaults>
</compile_context>

<pallas_src>
import functools

import jax
import jax.numpy as jnp
from jax.experimental import pallas as pl
from jax.experimental.pallas import tpu as pltpu


def _round_up(x, m):
    return (x + m - 1) // m * m


# ----------------------------- fused Pallas kernel ---------------------------

def _make_kernel(L, B, H, INp, Vin_pad):
    """Kernel for one decode step; grid axis 0 iterates (sequentially) over time."""
    G = 4 * H

    def kernel(ids_ref,                         # (1, B, 1) int32  : this step's tokens
               emb_ref,                         # (Vin_pad, INp) bf16, resident
               w_ref,                           # (L, Kp, 4H) bf16 merged [W_ih; W_hh]
               b_ref,                           # (L, 1, 4H) f32   combined bias
               wfc_ref, bfc_ref,                # (H, Vp) bf16, (1, Vp) f32
               h0_ref, c0_ref,                  # (L, B, H) f32    initial state
               preds_ref,                       # (1, B, Vp) f32   per-step logits
               h_out_ref, c_out_ref,            # (L, B, H) f32    final state
               h_sc, c_sc):                     # VMEM scratch (L, B, H) f32
        t = pl.program_id(0)

        # ---- load initial recurrent state into VMEM scratch once ----
        @pl.when(t == 0)
        def _():
            h_sc[...] = h0_ref[...]
            c_sc[...] = c0_ref[...]

        # ---- embedding lookup as a one-hot MXU gather (no serialized row copies) ----
        # TODO(synk): training-mode dropout (embedding & inter-layer) not implemented.
        ids = ids_ref[0]                                          # (B, 1) int32
        col = jax.lax.broadcasted_iota(jnp.int32, (B, Vin_pad), 1)
        one_hot = jnp.where(col == ids, 1.0, 0.0).astype(jnp.bfloat16)
        x = jnp.dot(one_hot, emb_ref[...],
                    preferred_element_type=jnp.float32)           # (B, INp) f32

        # lane mask selecting the "g" (tanh) gate columns; hoisted out of layer loop
        lane = jax.lax.broadcasted_iota(jnp.int32, (B, G), 1)
        is_g = jnp.logical_and(lane >= 2 * H, lane < 3 * H)

        layer_in = x
        for l in range(L):
            h_prev = h_sc[l]                                      # (B, H) f32
            c_prev = c_sc[l]                                      # (B, H) f32
            xh = jnp.concatenate([layer_in, h_prev], axis=-1)     # (B, Kp)
            gates = jnp.dot(xh.astype(jnp.bfloat16), w_ref[l],
                            preferred_element_type=jnp.float32) + b_ref[l]
            # "g" columns were pre-scaled by 2 at init: tanh(z) = 2*sigmoid(2z) - 1,
            # so a single full-width sigmoid pass covers all four gates.
            s = jax.nn.sigmoid(gates)
            act = jnp.where(is_g, 2.0 * s - 1.0, s)
            i = act[:, 0 * H:1 * H]
            f = act[:, 1 * H:2 * H]
            g = act[:, 2 * H:3 * H]
            o = act[:, 3 * H:4 * H]
            c_new = f * c_prev + i * g                            # f32 cell state
            h_new = o * jnp.tanh(c_new)
            h_sc[l] = h_new
            c_sc[l] = c_new
            if l + 1 < L:
                if INp == H:
                    layer_in = h_new
                else:                                             # (not taken at demo sizes)
                    layer_in = jnp.concatenate(
                        [h_new, jnp.zeros((B, INp - H), h_new.dtype)], axis=-1)
            else:
                layer_in = h_new                                  # (B, H)

        # ---- final linear, lane-dense (padded) per-step logits ----
        logits = jnp.dot(layer_in.astype(jnp.bfloat16), wfc_ref[...],
                         preferred_element_type=jnp.float32) + bfc_ref[...]
        preds_ref[0] = logits

        # ---- write final recurrent state only once, on the last step ----
        @pl.when(t == pl.num_programs(0) - 1)
        def _():
            h_out_ref[...] = h_sc[...]
            c_out_ref[...] = c_sc[...]

    return kernel


# ----------------------------- parameter setup -------------------------------

def init_params(key, input_size, embedding_size, hidden_size, num_layers,
                output_size, p=0.0):
    """Returns (kernel_params, f32_reference_params)."""
    H, E = hidden_size, embedding_size
    INp = max(E, H)                 # uniform layer-input width (pad E or H as needed)
    Kp = INp + H                    # merged [x, h] contraction width
    Vin_pad = _round_up(input_size, 128)
    Vp = _round_up(output_size, 128)
    scale = 0.1

    keys = jax.random.split(key, 3 + 3 * num_layers)

    emb = scale * jax.random.normal(keys[0], (input_size, E), jnp.float32)
    w_fc = scale * jax.random.normal(keys[1], (H, output_size), jnp.float32)
    b_fc = scale * jax.random.normal(keys[2], (output_size,), jnp.float32)

    ref = {"embedding": emb, "w_ih": [], "w_hh": [], "b": [],
           "w_fc": w_fc, "b_fc": b_fc, "p": p}

    emb_pad = jnp.zeros((Vin_pad, INp), jnp.float32).at[:input_size, :E].set(emb)

    w_stack = jnp.zeros((num_layers, Kp, 4 * H), jnp.float32)
    b_stack = jnp.zeros((num_layers, 1, 4 * H), jnp.float32)
    for l in range(num_layers):
        in_feat = E if l == 0 else H
        k0, k1, k2 = keys[3 + 3 * l: 6 + 3 * l]
        w_ih = scale * jax.random.normal(k0, (in_feat, 4 * H), jnp.float32)
        w_hh = scale * jax.random.normal(k1, (H, 4 * H), jnp.float32)
        b = scale * jax.random.normal(k2, (4 * H,), jnp.float32)
        ref["w_ih"].append(w_ih)
        ref["w_hh"].append(w_hh)
        ref["b"].append(b)
        w_stack = w_stack.at[l, :in_feat, :].set(w_ih)
        w_stack = w_stack.at[l, INp:INp + H, :].set(w_hh)
        b_stack = b_stack.at[l, 0, :].set(b)

    # pre-scale "g" gate columns by 2 (exact power-of-2 scaling, bf16-safe):
    # kernel then computes tanh via 2*sigmoid(2z) - 1 with a single sigmoid pass.
    gate_scale = jnp.ones((4 * H,), jnp.float32).at[2 * H:3 * H].set(2.0)
    w_stack = w_stack * gate_scale
    b_stack = b_stack * gate_scale

    w_fc_pad = jnp.zeros((H, Vp), jnp.float32).at[:, :output_size].set(w_fc)
    b_fc_pad = jnp.zeros((1, Vp), jnp.float32).at[0, :output_size].set(b_fc)

    params = {
        "embedding": emb_pad.astype(jnp.bfloat16),   # (Vin_pad, INp)
        "w": w_stack.astype(jnp.bfloat16),           # (L, Kp, 4H)
        "b": b_stack,                                 # (L, 1, 4H) f32
        "w_fc": w_fc_pad.astype(jnp.bfloat16),       # (H, Vp)
        "b_fc": b_fc_pad,                             # (1, Vp) f32
    }
    return params, ref


# ------------------------------- forward pass ---------------------------------

def decoder_lstm_decode(params, x_ids_seq, hidden_state, cell_state, *, output_size):
    """Teacher-forced multi-step decode, one fused pallas_call with grid=(T,).

    x_ids_seq:    (T, B) int32 token ids
    hidden_state: (num_layers, B, H) f32
    cell_state:   (num_layers, B, H) f32
    returns (predictions (T, B, output_size), hidden_state, cell_state)
    """
    T, B = x_ids_seq.shape
    L, _, H = hidden_state.shape
    Vin_pad, INp = params["embedding"].shape
    Vp = params["w_fc"].shape[1]

    kernel = _make_kernel(L, B, H, INp, Vin_pad)
    ids = x_ids_seq.astype(jnp.int32).reshape(T, B, 1)

    def _resident(shape):
        nd = len(shape)
        # constant index map -> block DMA'd once, stays VMEM-resident across the grid
        return pl.BlockSpec(shape, lambda t, _nd=nd: (0,) * _nd)

    in_specs = [
        pl.BlockSpec((1, B, 1), lambda t: (t, 0, 0)),        # per-step token ids
        _resident(params["embedding"].shape),
        _resident(params["w"].shape),
        _resident(params["b"].shape),
        _resident(params["w_fc"].shape),
        _resident(params["b_fc"].shape),
        _resident(hidden_state.shape),
        _resident(cell_state.shape),
    ]
    out_specs = (
        pl.BlockSpec((1, B, Vp), lambda t: (t, 0, 0)),       # per-step lane-dense logits
        _resident((L, B, H)),
        _resident((L, B, H)),
    )
    out_shapes = (
        jax.ShapeDtypeStruct((T, B, Vp), jnp.float32),
        jax.ShapeDtypeStruct((L, B, H), jnp.float32),
        jax.ShapeDtypeStruct((L, B, H), jnp.float32),
    )

    preds_pad, h_n, c_n = pl.pallas_call(
        kernel,
        out_shape=out_shapes,
        grid_spec=pltpu.PrefetchScalarGridSpec(
            num_scalar_prefetch=0,
            grid=(T,),
            in_specs=in_specs,
            out_specs=out_specs,
            scratch_shapes=[pltpu.VMEM((L, B, H), jnp.float32),   # h carry
                            pltpu.VMEM((L, B, H), jnp.float32)],  # c carry
        ),
        compiler_params=pltpu.CompilerParams(
            dimension_semantics=("arbitrary",)),  # sequential recurrence over time
    )(ids, params["embedding"], params["w"], params["b"],
      params["w_fc"], params["b_fc"], hidden_state, cell_state)

    return preds_pad[..., :output_size], h_n, c_n


def decoder_lstm_forward(params, x_ids, hidden_state, cell_state, *, output_size):
    """Single decode step — mirrors DecoderLSTM.forward exactly (x unsqueezed to T=1)."""
    preds, h_n, c_n = decoder_lstm_decode(
        params, x_ids[None, :], hidden_state, cell_state, output_size=output_size)
    return preds[0], h_n, c_n


# ------------------------------ pure-JAX reference -----------------------------

def _reference_decode(ref, x_seq, h0, c0):
    L = h0.shape[0]
    h = [h0[l] for l in range(L)]
    c = [c0[l] for l in range(L)]
    preds = []
    for t in range(x_seq.shape[0]):
        inp = ref["embedding"][x_seq[t]]
        for l in range(L):
            gates = inp @ ref["w_ih"][l] + h[l] @ ref["w_hh"][l] + ref["b"][l]
            i, f, g, o = jnp.split(gates, 4, axis=-1)
            i = jax.nn.sigmoid(i)
            f = jax.nn.sigmoid(f)
            g = jnp.tanh(g)
            o = jax.nn.sigmoid(o)
            c[l] = f * c[l] + i * g
            h[l] = o * jnp.tanh(c[l])
            inp = h[l]
        preds.append(inp @ ref["w_fc"] + ref["b_fc"])
    return jnp.stack(preds), jnp.stack(h), jnp.stack(c)


# ----------------------------------- main --------------------------------------

if __name__ == "__main__":
    input_size = 50        # source vocab size (embedding rows)
    embedding_size = 32
    hidden_size = 32
    num_layers = 2
    output_size = 64       # len(claim.vocab) stand-in
    batch = 8
    steps = 6              # teacher-forced decode length for the fused-T demo

    key = jax.random.PRNGKey(0)
    k_param, k_x, k_h, k_c = jax.random.split(key, 4)

    params, ref = init_params(k_param, input_size, embedding_size, hidden_size,
                              num_layers, output_size, p=0.0)

    x_seq = jax.random.randint(k_x, (steps, batch), 0, input_size, dtype=jnp.int32)
    h0 = 0.1 * jax.random.normal(k_h, (num_layers, batch, hidden_size), jnp.float32)
    c0 = 0.1 * jax.random.normal(k_c, (num_layers, batch, hidden_size), jnp.float32)

    forward = jax.jit(functools.partial(decoder_lstm_forward, output_size=output_size))
    decode = jax.jit(functools.partial(decoder_lstm_decode, output_size=output_size))

    # single step (matches DecoderLSTM.forward)
    preds1, h1, c1 = forward(params, x_seq[0], h0, c0)
    # full teacher-forced decode: ONE kernel launch, grid over time
    preds_seq, h_n, c_n = decode(params, x_seq, h0, c0)
    jax.block_until_ready((preds1, h1, c1, preds_seq, h_n, c_n))

    assert preds1.shape == (batch, output_size)
    assert preds_seq.shape == (steps, batch, output_size)
    assert h_n.shape == (num_layers, batch, hidden_size)
    assert c_n.shape == (num_layers, batch, hidden_size)
    assert bool(jnp.all(jnp.isfinite(preds_seq)))

    # f32 reference (kernel uses bf16 matmul operands -> loose tolerance)
    ref_preds, ref_h, ref_c = _reference_decode(ref, x_seq, h0, c0)
    assert bool(jnp.allclose(preds1, ref_preds[0], atol=2e-2, rtol=2e-2))
    assert bool(jnp.allclose(preds_seq, ref_preds, atol=2e-2, rtol=2e-2))
    assert bool(jnp.allclose(h_n, ref_h, atol=2e-2, rtol=2e-2))
    assert bool(jnp.allclose(c_n, ref_c, atol=2e-2, rtol=2e-2))

    print("KERNEL_OK")
</pallas_src>

<mosaic_0001>
module attributes {stable_mosaic.version = 11 : i64} {
  func.func @kernel(%arg0: i32, %arg1: memref<1x8x1xi32, #tpu.memory_space<vmem>>, %arg2: memref<128x32xbf16, #tpu.memory_space<vmem>>, %arg3: memref<2x64x128xbf16, #tpu.memory_space<vmem>>, %arg4: memref<2x1x128xf32, #tpu.memory_space<vmem>>, %arg5: memref<32x128xbf16, #tpu.memory_space<vmem>>, %arg6: memref<1x128xf32, #tpu.memory_space<vmem>>, %arg7: memref<2x8x32xf32, #tpu.memory_space<vmem>>, %arg8: memref<2x8x32xf32, #tpu.memory_space<vmem>>, %arg9: memref<1x8x128xf32, #tpu.memory_space<vmem>>, %arg10: memref<2x8x32xf32, #tpu.memory_space<vmem>>, %arg11: memref<2x8x32xf32, #tpu.memory_space<vmem>>, %arg12: memref<2x8x32xf32, #tpu.memory_space<vmem>>, %arg13: memref<2x8x32xf32, #tpu.memory_space<vmem>>) attributes {dimension_semantics = [#tpu.dimension_semantics<arbitrary>], iteration_bounds = array<i64: 1>, scalar_prefetch = 0 : i64, scratch_operands = 2 : i64, tpu.core_type = #tpu.core_type<tc>, window_params = [{transform_indices = @transform_0, window_bounds = array<i64: 1, 8, 1>}, {pipeline_mode = #tpu.pipeline_mode<synchronous>, transform_indices = @transform_1, window_bounds = array<i64: 128, 32>}, {pipeline_mode = #tpu.pipeline_mode<synchronous>, transform_indices = @transform_2, window_bounds = array<i64: 2, 64, 128>}, {pipeline_mode = #tpu.pipeline_mode<synchronous>, transform_indices = @transform_3, window_bounds = array<i64: 2, 1, 128>}, {pipeline_mode = #tpu.pipeline_mode<synchronous>, transform_indices = @transform_4, window_bounds = array<i64: 32, 128>}, {pipeline_mode = #tpu.pipeline_mode<synchronous>, transform_indices = @transform_5, window_bounds = array<i64: 1, 128>}, {pipeline_mode = #tpu.pipeline_mode<synchronous>, transform_indices = @transform_6, window_bounds = array<i64: 2, 8, 32>}, {pipeline_mode = #tpu.pipeline_mode<synchronous>, transform_indices = @transform_7, window_bounds = array<i64: 2, 8, 32>}, {transform_indices = @transform_8, window_bounds = array<i64: 1, 8, 128>}, {pipeline_mode = #tpu.pipeline_mode<synchronous>, transform_indices = @transform_9, window_bounds = array<i64: 2, 8, 32>}, {pipeline_mode = #tpu.pipeline_mode<synchronous>, transform_indices = @transform_10, window_bounds = array<i64: 2, 8, 32>}]} {
    %c0_i32 = arith.constant 0 : i32
    %0 = arith.cmpi eq, %arg0, %c0_i32 : i32
    %1 = arith.extui %0 : i1 to i32
    %c0_i32_0 = arith.constant 0 : i32
    %2 = arith.cmpi ne, %1, %c0_i32_0 : i32
    scf.if %2 {
      %c0_60 = arith.constant 0 : index
      %c0_61 = arith.constant 0 : index
      %c0_62 = arith.constant 0 : index
      %108 = vector.load %arg7[%c0_60, %c0_61, %c0_62] : memref<2x8x32xf32, #tpu.memory_space<vmem>>, vector<2x8x32xf32>
      %c0_63 = arith.constant 0 : index
      %c0_64 = arith.constant 0 : index
      %c0_65 = arith.constant 0 : index
      %109 = vector.load %arg12[%c0_63, %c0_64, %c0_65] : memref<2x8x32xf32, #tpu.memory_space<vmem>>, vector<2x8x32xf32>
      tpu.vector_store %arg12[%c0_63, %c0_64, %c0_65], %108 {strides = array<i32>} : memref<2x8x32xf32, #tpu.memory_space<vmem>>, vector<2x8x32xf32>,
      %c0_66 = arith.constant 0 : index
      %c0_67 = arith.constant 0 : index
      %c0_68 = arith.constant 0 : index
      %110 = vector.load %arg8[%c0_66, %c0_67, %c0_68] : memref<2x8x32xf32, #tpu.memory_space<vmem>>, vector<2x8x32xf32>
      %c0_69 = arith.constant 0 : index
      %c0_70 = arith.constant 0 : index
      %c0_71 = arith.constant 0 : index
      %111 = vector.load %arg13[%c0_69, %c0_70, %c0_71] : memref<2x8x32xf32, #tpu.memory_space<vmem>>, vector<2x8x32xf32>
      tpu.vector_store %arg13[%c0_69, %c0_70, %c0_71], %110 {strides = array<i32>} : memref<2x8x32xf32, #tpu.memory_space<vmem>>, vector<2x8x32xf32>,
    } else {
    }
    %c0 = arith.constant 0 : index
    %c0_1 = arith.constant 0 : index
    %c0_2 = arith.constant 0 : index
    %3 = vector.load %arg1[%c0, %c0_1, %c0_2] : memref<1x8x1xi32, #tpu.memory_space<vmem>>, vector<1x8x1xi32>
    %4 = vector.shape_cast %3 : vector<1x8x1xi32> to vector<8x1xi32>
    %5 = tpu.iota {dimensions = array<i32: 1>} : vector<8x128xi32>
    %6 = vector.broadcast %4 : vector<8x1xi32> to vector<8x128xi32>
    %7 = arith.cmpi eq, %5, %6 : vector<8x128xi32>
    %cst = arith.constant 1.000000e+00 : f32
    %cst_3 = arith.constant 0.000000e+00 : f32
    %8 = vector.broadcast %cst : f32 to vector<8x128xf32>
    %9 = vector.broadcast %cst_3 : f32 to vector<8x128xf32>
    %10 = arith.select %7, %8, %9 : vector<8x128xi1>, vector<8x128xf32>
    %11 = arith.truncf %10 : vector<8x128xf32> to vector<8x128xbf16>
    %c0_4 = arith.constant 0 : index
    %c0_5 = arith.constant 0 : index
    %12 = vector.load %arg2[%c0_4, %c0_5] : memref<128x32xbf16, #tpu.memory_space<vmem>>, vector<128x32xbf16>
    %cst_6 = arith.constant dense<0.000000e+00> : vector<8x32xf32>
    %13 = tpu.matmul %11, %12, %cst_6 {dimension_numbers = #tpu.dot_dimension_numbers<[1], [0], [0], [1], [0, 0, 1, 1], [], []>} : vector<8x128xbf16>, vector<128x32xbf16>, vector<8x32xf32> -> vector<8x32xf32>
    %14 = tpu.iota {dimensions = array<i32: 1>} : vector<8x128xi32>
    %c64_i32 = arith.constant 64 : i32
    %15 = vector.broadcast %c64_i32 : i32 to vector<8x128xi32>
    %16 = arith.cmpi sge, %14, %15 : vector<8x128xi32>
    %c96_i32 = arith.constant 96 : i32
    %17 = vector.broadcast %c96_i32 : i32 to vector<8x128xi32>
    %18 = arith.cmpi slt, %14, %17 : vector<8x128xi32>
    %19 = arith.andi %16, %18 : vector<8x128xi1>
    %c0_7 = arith.constant 0 : index
    %c0_8 = arith.constant 0 : index
    %c0_9 = arith.constant 0 : index
    %20 = vector.load %arg12[%c0_7, %c0_8, %c0_9] : memref<2x8x32xf32, #tpu.memory_space<vmem>>, vector<1x8x32xf32>
    %21 = vector.shape_cast %20 : vector<1x8x32xf32> to vector<8x32xf32>
    %c0_10 = arith.constant 0 : index
    %c0_11 = arith.constant 0 : index
    %c0_12 = arith.constant 0 : index
    %22 = vector.load %arg13[%c0_10, %c0_11, %c0_12] : memref<2x8x32xf32, #tpu.memory_space<vmem>>, vector<1x8x32xf32>
    %23 = vector.shape_cast %22 : vector<1x8x32xf32> to vector<8x32xf32>
    %24 = tpu.concatenate %13, %21 in 1 : vector<8x32xf32>, vector<8x32xf32> -> vector<8x64xf32>
    %25 = arith.truncf %24 : vector<8x64xf32> to vector<8x64xbf16>
    %c0_13 = arith.constant 0 : index
    %c0_14 = arith.constant 0 : index
    %c0_15 = arith.constant 0 : index
    %26 = vector.load %arg3[%c0_13, %c0_14, %c0_15] : memref<2x64x128xbf16, #tpu.memory_space<vmem>>, vector<1x64x128xbf16>
    %27 = vector.shape_cast %26 : vector<1x64x128xbf16> to vector<64x128xbf16>
    %cst_16 = arith.constant dense<0.000000e+00> : vector<8x128xf32>
    %28 = tpu.matmul %25, %27, %cst_16 {dimension_numbers = #tpu.dot_dimension_numbers<[1], [0], [0], [1], [0, 0, 1, 1], [], []>} : vector<8x64xbf16>, vector<64x128xbf16>, vector<8x128xf32> -> vector<8x128xf32>
    %c0_17 = arith.constant 0 : index
    %c0_18 = arith.constant 0 : index
    %c0_19 = arith.constant 0 : index
    %29 = vector.load %arg4[%c0_17, %c0_18, %c0_19] : memref<2x1x128xf32, #tpu.memory_space<vmem>>, vector<1x1x128xf32>
    %30 = vector.shape_cast %29 : vector<1x1x128xf32> to vector<1x128xf32>
    %31 = vector.broadcast %30 : vector<1x128xf32> to vector<8x128xf32>
    %32 = arith.addf %28, %31 : vector<8x128xf32>
    %33 = arith.negf %32 : vector<8x128xf32>
    %34 = math.exp %33 : vector<8x128xf32>
    %cst_20 = arith.constant 1.000000e+00 : f32
    %35 = vector.broadcast %cst_20 : f32 to vector<8x128xf32>
    %36 = arith.addf %35, %34 : vector<8x128xf32>
    %37 = arith.divf %35, %36 : vector<8x128xf32>
    %cst_21 = arith.constant 2.000000e+00 : f32
    %38 = vector.broadcast %cst_21 : f32 to vector<8x128xf32>
    %39 = arith.mulf %38, %37 : vector<8x128xf32>
    %cst_22 = arith.constant 1.000000e+00 : f32
    %40 = vector.broadcast %cst_22 : f32 to vector<8x128xf32>
    %41 = arith.subf %39, %40 : vector<8x128xf32>
    %42 = arith.select %19, %41, %37 : vector<8x128xi1>, vector<8x128xf32>
    %43 = vector.extract_strided_slice %42 {offsets = [0, 0], sizes = [8, 32], strides = [1, 1]} : vector<8x128xf32> to vector<8x32xf32>
    %44 = vector.extract_strided_slice %42 {offsets = [0, 32], sizes = [8, 32], strides = [1, 1]} : vector<8x128xf32> to vector<8x32xf32>
    %45 = vector.extract_strided_slice %42 {offsets = [0, 64], sizes = [8, 32], strides = [1, 1]} : vector<8x128xf32> to vector<8x32xf32>
    %46 = vector.extract_strided_slice %42 {offsets = [0, 96], sizes = [8, 32], strides = [1, 1]} : vector<8x128xf32> to vector<8x32xf32>
    %47 = arith.mulf %44, %23 : vector<8x32xf32>
    %48 = arith.mulf %43, %45 : vector<8x32xf32>
    %49 = arith.addf %47, %48 : vector<8x32xf32>
    %50 = math.tanh %49 : vector<8x32xf32>
    %51 = arith.mulf %46, %50 : vector<8x32xf32>
    %c0_23 = arith.constant 0 : index
    %c0_24 = arith.constant 0 : index
    %c0_25 = arith.constant 0 : index
    %52 = vector.load %arg12[%c0_23, %c0_24, %c0_25] : memref<2x8x32xf32, #tpu.memory_space<vmem>>, vector<1x8x32xf32>
    %53 = vector.shape_cast %52 : vector<1x8x32xf32> to vector<8x32xf32>
    %54 = vector.shape_cast %51 : vector<8x32xf32> to vector<1x8x32xf32>
    tpu.vector_store %arg12[%c0_23, %c0_24, %c0_25], %54 {strides = array<i32>} : memref<2x8x32xf32, #tpu.memory_space<vmem>>, vector<1x8x32xf32>,
    %c0_26 = arith.constant 0 : index
    %c0_27 = arith.constant 0 : index
    %c0_28 = arith.constant 0 : index
    %55 = vector.load %arg13[%c0_26, %c0_27, %c0_28] : memref<2x8x32xf32, #tpu.memory_space<vmem>>, vector<1x8x32xf32>
    %56 = vector.shape_cast %55 : vector<1x8x32xf32> to vector<8x32xf32>
    %57 = vector.shape_cast %49 : vector<8x32xf32> to vector<1x8x32xf32>
    tpu.vector_store %arg13[%c0_26, %c0_27, %c0_28], %57 {strides = array<i32>} : memref<2x8x32xf32, #tpu.memory_space<vmem>>, vector<1x8x32xf32>,
    %c1 = arith.constant 1 : index
    %c0_29 = arith.constant 0 : index
    %c0_30 = arith.constant 0 : index
    %58 = vector.load %arg12[%c1, %c0_29, %c0_30] : memref<2x8x32xf32, #tpu.memory_space<vmem>>, vector<1x8x32xf32>
    %59 = vector.shape_cast %58 : vector<1x8x32xf32> to vector<8x32xf32>
    %c1_31 = arith.constant 1 : index
    %c0_32 = arith.constant 0 : index
    %c0_33 = arith.constant 0 : index
    %60 = vector.load %arg13[%c1_31, %c0_32, %c0_33] : memref<2x8x32xf32, #tpu.memory_space<vmem>>, vector<1x8x32xf32>
    %61 = vector.shape_cast %60 : vector<1x8x32xf32> to vector<8x32xf32>
    %62 = tpu.concatenate %51, %59 in 1 : vector<8x32xf32>, vector<8x32xf32> -> vector<8x64xf32>
    %63 = arith.truncf %62 : vector<8x64xf32> to vector<8x64xbf16>
    %c1_34 = arith.constant 1 : index
    %c0_35 = arith.constant 0 : index
    %c0_36 = arith.constant 0 : index
    %64 = vector.load %arg3[%c1_34, %c0_35, %c0_36] : memref<2x64x128xbf16, #tpu.memory_space<vmem>>, vector<1x64x128xbf16>
    %65 = vector.shape_cast %64 : vector<1x64x128xbf16> to vector<64x128xbf16>
    %cst_37 = arith.constant dense<0.000000e+00> : vector<8x128xf32>
    %66 = tpu.matmul %63, %65, %cst_37 {dimension_numbers = #tpu.dot_dimension_numbers<[1], [0], [0], [1], [0, 0, 1, 1], [], []>} : vector<8x64xbf16>, vector<64x128xbf16>, vector<8x128xf32> -> vector<8x128xf32>
    %c1_38 = arith.constant 1 : index
    %c0_39 = arith.constant 0 : index
    %c0_40 = arith.constant 0 : index
    %67 = vector.load %arg4[%c1_38, %c0_39, %c0_40] : memref<2x1x128xf32, #tpu.memory_space<vmem>>, vector<1x1x128xf32>
    %68 = vector.shape_cast %67 : vector<1x1x128xf32> to vector<1x128xf32>
    %69 = vector.broadcast %68 : vector<1x128xf32> to vector<8x128xf32>
    %70 = arith.addf %66, %69 : vector<8x128xf32>
    %71 = arith.negf %70 : vector<8x128xf32>
    %72 = math.exp %71 : vector<8x128xf32>
    %cst_41 = arith.constant 1.000000e+00 : f32
    %73 = vector.broadcast %cst_41 : f32 to vector<8x128xf32>
    %74 = arith.addf %73, %72 : vector<8x128xf32>
    %75 = arith.divf %73, %74 : vector<8x128xf32>
    %cst_42 = arith.constant 2.000000e+00 : f32
    %76 = vector.broadcast %cst_42 : f32 to vector<8x128xf32>
    %77 = arith.mulf %76, %75 : vector<8x128xf32>
    %cst_43 = arith.constant 1.000000e+00 : f32
    %78 = vector.broadcast %cst_43 : f32 to vector<8x128xf32>
    %79 = arith.subf %77, %78 : vector<8x128xf32>
    %80 = arith.select %19, %79, %75 : vector<8x128xi1>, vector<8x128xf32>
    %81 = vector.extract_strided_slice %80 {offsets = [0, 0], sizes = [8, 32], strides = [1, 1]} : vector<8x128xf32> to vector<8x32xf32>
    %82 = vector.extract_strided_slice %80 {offsets = [0, 32], sizes = [8, 32], strides = [1, 1]} : vector<8x128xf32> to vector<8x32xf32>
    %83 = vector.extract_strided_slice %80 {offsets = [0, 64], sizes = [8, 32], strides = [1, 1]} : vector<8x128xf32> to vector<8x32xf32>
    %84 = vector.extract_strided_slice %80 {offsets = [0, 96], sizes = [8, 32], strides = [1, 1]} : vector<8x128xf32> to vector<8x32xf32>
    %85 = arith.mulf %82, %61 : vector<8x32xf32>
    %86 = arith.mulf %81, %83 : vector<8x32xf32>
    %87 = arith.addf %85, %86 : vector<8x32xf32>
    %88 = math.tanh %87 : vector<8x32xf32>
    %89 = arith.mulf %84, %88 : vector<8x32xf32>
    %c1_44 = arith.constant 1 : index
    %c0_45 = arith.constant 0 : index
    %c0_46 = arith.constant 0 : index
    %90 = vector.load %arg12[%c1_44, %c0_45, %c0_46] : memref<2x8x32xf32, #tpu.memory_space<vmem>>, vector<1x8x32xf32>
    %91 = vector.shape_cast %90 : vector<1x8x32xf32> to vector<8x32xf32>
    %92 = vector.shape_cast %89 : vector<8x32xf32> to vector<1x8x32xf32>
    tpu.vector_store %arg12[%c1_44, %c0_45, %c0_46], %92 {strides = array<i32>} : memref<2x8x32xf32, #tpu.memory_space<vmem>>, vector<1x8x32xf32>,
    %c1_47 = arith.constant 1 : index
    %c0_48 = arith.constant 0 : index
    %c0_49 = arith.constant 0 : index
    %93 = vector.load %arg13[%c1_47, %c0_48, %c0_49] : memref<2x8x32xf32, #tpu.memory_space<vmem>>, vector<1x8x32xf32>
    %94 = vector.shape_cast %93 : vector<1x8x32xf32> to vector<8x32xf32>
    %95 = vector.shape_cast %87 : vector<8x32xf32> to vector<1x8x32xf32>
    tpu.vector_store %arg13[%c1_47, %c0_48, %c0_49], %95 {strides = array<i32>} : memref<2x8x32xf32, #tpu.memory_space<vmem>>, vector<1x8x32xf32>,
    %96 = arith.truncf %89 : vector<8x32xf32> to vector<8x32xbf16>
    %c0_50 = arith.constant 0 : index
    %c0_51 = arith.constant 0 : index
    %97 = vector.load %arg5[%c0_50, %c0_51] : memref<32x128xbf16, #tpu.memory_space<vmem>>, vector<32x128xbf16>
    %cst_52 = arith.constant dense<0.000000e+00> : vector<8x128xf32>
    %98 = tpu.matmul %96, %97, %cst_52 {dimension_numbers = #tpu.dot_dimension_numbers<[1], [0], [0], [1], [0, 0, 1, 1], [], []>} : vector<8x32xbf16>, vector<32x128xbf16>, vector<8x128xf32> -> vector<8x128xf32>
    %c0_53 = arith.constant 0 : index
    %c0_54 = arith.constant 0 : index
    %99 = vector.load %arg6[%c0_53, %c0_54] : memref<1x128xf32, #tpu.memory_space<vmem>>, vector<1x128xf32>
    %100 = vector.broadcast %99 : vector<1x128xf32> to vector<8x128xf32>
    %101 = arith.addf %98, %100 : vector<8x128xf32>
    %c0_55 = arith.constant 0 : index
    %c0_56 = arith.constant 0 : index
    %c0_57 = arith.constant 0 : index
    %102 = vector.load %arg9[%c0_55, %c0_56, %c0_57] : memref<1x8x128xf32, #tpu.memory_space<vmem>>, vector<1x8x128xf32>
    %103 = vector.shape_cast %102 : vector<1x8x128xf32> to vector<8x128xf32>
    %104 = vector.shape_cast %101 : vector<8x128xf32> to vector<1x8x128xf32>
    tpu.vector_store %arg9[%c0_55, %c0_56, %c0_57], %104 {strides = array<i32>} : memref<1x8x128xf32, #tpu.memory_space<vmem>>, vector<1x8x128xf32>,
    %c0_i32_58 = arith.constant 0 : i32
    %105 = arith.cmpi eq, %arg0, %c0_i32_58 : i32
    %106 = arith.extui %105 : i1 to i32
    %c0_i32_59 = arith.constant 0 : i32
    %107 = arith.cmpi ne, %106, %c0_i32_59 : i32
    scf.if %107 {
      %c0_60 = arith.constant 0 : index
      %c0_61 = arith.constant 0 : index
      %c0_62 = arith.constant 0 : index
      %108 = vector.load %arg12[%c0_60, %c0_61, %c0_62] : memref<2x8x32xf32, #tpu.memory_space<vmem>>, vector<2x8x32xf32>
      %c0_63 = arith.constant 0 : index
      %c0_64 = arith.constant 0 : index
      %c0_65 = arith.constant 0 : index
      %109 = vector.load %arg10[%c0_63, %c0_64, %c0_65] : memref<2x8x32xf32, #tpu.memory_space<vmem>>, vector<2x8x32xf32>
      tpu.vector_store %arg10[%c0_63, %c0_64, %c0_65], %108 {strides = array<i32>} : memref<2x8x32xf32, #tpu.memory_space<vmem>>, vector<2x8x32xf32>,
      %c0_66 = arith.constant 0 : index
      %c0_67 = arith.constant 0 : index
      %c0_68 = arith.constant 0 : index
      %110 = vector.load %arg13[%c0_66, %c0_67, %c0_68] : memref<2x8x32xf32, #tpu.memory_space<vmem>>, vector<2x8x32xf32>
      %c0_69 = arith.constant 0 : index
      %c0_70 = arith.constant 0 : index
      %c0_71 = arith.constant 0 : index
      %111 = vector.load %arg11[%c0_69, %c0_70, %c0_71] : memref<2x8x32xf32, #tpu.memory_space<vmem>>, vector<2x8x32xf32>
      tpu.vector_store %arg11[%c0_69, %c0_70, %c0_71], %110 {strides = array<i32>} : memref<2x8x32xf32, #tpu.memory_space<vmem>>, vector<2x8x32xf32>,
    } else {
    }
    return
  }
  func.func @transform_0(%arg0: i32) -> (i32, i32, i32) {
    %c0_i32 = arith.constant 0 : i32
    %c0_i32_0 = arith.constant 0 : i32
    %c0_i32_1 = arith.constant 0 : i32
    return %arg0, %c0_i32, %c0_i32_0 : i32, i32, i32
  }
  func.func @transform_1(%arg0: i32) -> (i32, i32) {
    %c0_i32 = arith.constant 0 : i32
    %c0_i32_0 = arith.constant 0 : i32
    %c0_i32_1 = arith.constant 0 : i32
    return %c0_i32, %c0_i32_0 : i32, i32
  }
  func.func @transform_2(%arg0: i32) -> (i32, i32, i32) {
    %c0_i32 = arith.constant 0 : i32
    %c0_i32_0 = arith.constant 0 : i32
    %c0_i32_1 = arith.constant 0 : i32
    %c0_i32_2 = arith.constant 0 : i32
    return %c0_i32, %c0_i32_0, %c0_i32_1 : i32, i32, i32
  }
  func.func @transform_3(%arg0: i32) -> (i32, i32, i32) {
    %c0_i32 = arith.constant 0 : i32
    %c0_i32_0 = arith.constant 0 : i32
    %c0_i32_1 = arith.constant 0 : i32
    %c0_i32_2 = arith.constant 0 : i32
    return %c0_i32, %c0_i32_0, %c0_i32_1 : i32, i32, i32
  }
  func.func @transform_4(%arg0: i32) -> (i32, i32) {
    %c0_i32 = arith.constant 0 : i32
    %c0_i32_0 = arith.constant 0 : i32
    %c0_i32_1 = arith.constant 0 : i32
    return %c0_i32, %c0_i32_0 : i32, i32
  }
  func.func @transform_5(%arg0: i32) -> (i32, i32) {
    %c0_i32 = arith.constant 0 : i32
    %c0_i32_0 = arith.constant 0 : i32
    %c0_i32_1 = arith.constant 0 : i32
    return %c0_i32, %c0_i32_0 : i32, i32
  }
  func.func @transform_6(%arg0: i32) -> (i32, i32, i32) {
    %c0_i32 = arith.constant 0 : i32
    %c0_i32_0 = arith.constant 0 : i32
    %c0_i32_1 = arith.constant 0 : i32
    %c0_i32_2 = arith.constant 0 : i32
    return %c0_i32, %c0_i32_0, %c0_i32_1 : i32, i32, i32
  }
  func.func @transform_7(%arg0: i32) -> (i32, i32, i32) {
    %c0_i32 = arith.constant 0 : i32
    %c0_i32_0 = arith.constant 0 : i32
    %c0_i32_1 = arith.constant 0 : i32
    %c0_i32_2 = arith.constant 0 : i32
    return %c0_i32, %c0_i32_0, %c0_i32_1 : i32, i32, i32
  }
  func.func @transform_8(%arg0: i32) -> (i32, i32, i32) {
    %c0_i32 = arith.constant 0 : i32
    %c0_i32_0 = arith.constant 0 : i32
    %c0_i32_1 = arith.constant 0 : i32
    return %arg0, %c0_i32, %c0_i32_0 : i32, i32, i32
  }
  func.func @transform_9(%arg0: i32) -> (i32, i32, i32) {
    %c0_i32 = arith.constant 0 : i32
    %c0_i32_0 = arith.constant 0 : i32
    %c0_i32_1 = arith.constant 0 : i32
    %c0_i32_2 = arith.constant 0 : i32
    return %c0_i32, %c0_i32_0, %c0_i32_1 : i32, i32, i32
  }
  func.func @transform_10(%arg0: i32) -> (i32, i32, i32) {
    %c0_i32 = arith.constant 0 : i32
    %c0_i32_0 = arith.constant 0 : i32
    %c0_i32_1 = arith.constant 0 : i32
    %c0_i32_2 = arith.constant 0 : i32
    return %c0_i32, %c0_i32_0, %c0_i32_1 : i32, i32, i32
  }
}

</mosaic_0001>

<llo_original>
// kernel: decoder_lstm_forward.1
$region0: #{decoder_lstm_forward.1}
  #allocation0 [shape = 'u32[]', space=smem, size = 0x4, offset = 0x4, fixed_abs, tag = 'smem constant byte address 0x4 - core index']
  #allocation1 [shape = 'u32[72,128]{1,0:T(1,128)}', space=vmem, size = 0x9000, scoped, tag = 'internal scratch']
  #allocation2 [shape = 'f32[2,8,32]{2,1,0:T(8,128)}', space=vmem, size = 0x2000, scoped, tag = 'scratch operand']
  #allocation3 [shape = 'f32[2,8,32]{2,1,0:T(8,128)}', space=vmem, size = 0x2000, scoped, tag = 'scratch operand']
  %s0 = inlined_call_operand.vmem [shape: s32[1,8,1], index: 0, kind: input, shape index: {}]
  %s1 = inlined_call_operand.vmem [shape: bf16[128,32], index: 1, kind: input, shape index: {}]
  %s2 = inlined_call_operand.vmem [shape: bf16[2,64,128], index: 2, kind: input, shape index: {}]
  %s3 = inlined_call_operand.vmem [shape: f32[2,1,128], index: 3, kind: input, shape index: {}]
  %s4 = inlined_call_operand.vmem [shape: bf16[32,128], index: 4, kind: input, shape index: {}]
  %s5 = inlined_call_operand.vmem [shape: f32[1,128], index: 5, kind: input, shape index: {}]
  %s6 = inlined_call_operand.hbm [shape: f32[2,8,32], index: 6, kind: input, shape index: {}]
  %s7 = inlined_call_operand.hbm [shape: f32[2,8,32], index: 7, kind: input, shape index: {}]
  %s8 = inlined_call_operand.vmem [shape: f32[1,8,128], index: 8, kind: output, shape index: {0}]
  %s9 = inlined_call_operand.hbm [shape: f32[2,8,32], index: 9, kind: output, shape index: {1}]
  %s10 = inlined_call_operand.hbm [shape: f32[2,8,32], index: 10, kind: output, shape index: {2}]
  %11 = xla_tuple %s8, %s9, %s10
  %s12 = sld [smem:[#allocation0]]
  $region74: #{decoder_lstm_forward.1} parent=0
    _
  %s14 = ssub.s32 1, %s12
  %s15 = scalar_select 0, %s14, %s12
  $region1: #{decoder_lstm_forward.1} parent=0
    #allocation4 [shape = 'u8[8192]{0}', space=vmem, size = 0x2000, scoped, tag = 'input window, operand 6, single buffered']
    #allocation5 [shape = 's32[1]{0}', space=sflag, size = 0x4, scoped, tag = 'scoped memory for decoder_lstm_forward.1']
    #allocation6 [shape = 's32[1]{0}', space=sflag, size = 0x4, scoped, tag = 'scoped memory for decoder_lstm_forward.1']
    #allocation7 [shape = 'u8[8192]{0}', space=vmem, size = 0x2000, scoped, tag = 'input window, operand 7, single buffered']
    #allocation8 [shape = 's32[1]{0}', space=sflag, size = 0x4, scoped, tag = 'scoped memory for decoder_lstm_forward.1']
    #allocation9 [shape = 'u8[8192]{0}', space=vmem, size = 0x2000, scoped, tag = 'output window, operand 1, single buffered']
    #allocation10 [shape = 'u8[8192]{0}', space=vmem, size = 0x2000, scoped, tag = 'output window, operand 2, single buffered']
    #allocation11 [shape = 's32[1]{0}', space=sflag, size = 0x4, scoped, tag = 'scoped memory for decoder_lstm_forward.1']
    %16 = vsyncpa [#allocation5], 0
    %17 = vsyncpa [#allocation8], 0
    %18 = vsyncpa [#allocation6], 0
    %19 = vsyncpa [#allocation11], 0
    // Predicated region
    $region2: #{decoder_lstm_forward.1} parent=1 // pred_check
      _
    $region3: #{decoder_lstm_forward.1} parent=1 // pred_check_branch
      %21 = sbr.rel (0) target = $region5
    $region4: #{decoder_lstm_forward.1} parent=1 // pred_region
      _
    $region5: #{decoder_lstm_forward.1} parent=1 // pred_fallthru
      _
    // Predicated region
    $region6: #{decoder_lstm_forward.1} parent=1 // pred_check
      _
    $region7: #{decoder_lstm_forward.1} parent=1 // pred_check_branch
      %23 = sbr.rel (0) target = $region9
    $region8: #{decoder_lstm_forward.1} parent=1 // pred_region
      _
    $region9: #{decoder_lstm_forward.1} parent=1 // pred_fallthru
      _
    // Predicated region
    $region10: #{decoder_lstm_forward.1} parent=1 // pred_check
      _
    $region11: #{decoder_lstm_forward.1} parent=1 // pred_check_branch
      %25 = sbr.rel (0) target = $region13
    $region12: #{decoder_lstm_forward.1} parent=1 // pred_region
      _
    $region13: #{decoder_lstm_forward.1} parent=1 // pred_fallthru
      _
    // Predicated region
    $region14: #{decoder_lstm_forward.1} parent=1 // pred_check
      _
    $region15: #{decoder_lstm_forward.1} parent=1 // pred_check_branch
      %27 = sbr.rel (0) target = $region17
    $region16: #{decoder_lstm_forward.1} parent=1 // pred_region
      _
    $region17: #{decoder_lstm_forward.1} parent=1 // pred_fallthru
      _
    // Predicated region
    $region18: #{decoder_lstm_forward.1} parent=1 // pred_check
      _
    $region19: #{decoder_lstm_forward.1} parent=1 // pred_check_branch
      %29 = sbr.rel (0) target = $region21
    $region20: #{decoder_lstm_forward.1} parent=1 // pred_region
      _
    $region21: #{decoder_lstm_forward.1} parent=1 // pred_fallthru
      _
    // Predicated region
    $region22: #{decoder_lstm_forward.1} parent=1 // pred_check
      _
    $region23: #{decoder_lstm_forward.1} parent=1 // pred_check_branch
      %31 = sbr.rel (0) target = $region25
    $region24: #{decoder_lstm_forward.1} parent=1 // pred_region
      _
    $region25: #{decoder_lstm_forward.1} parent=1 // pred_fallthru
      _
    // Predicated region
    $region26: #{decoder_lstm_forward.1} parent=1 // pred_check
      _
    $region27: #{decoder_lstm_forward.1} parent=1 // pred_check_branch
      %33 = sbr.rel (0) target = $region29
    $region28: #{decoder_lstm_forward.1} parent=1 // pred_region
      %35 = vsyncadd [#allocation5], 0
      %s36 = sshll.u32 %s6, 4
      %s37 = int_to_ptr.hbm [resolvable:$true] %s36
      %s38 = sshll.u32 [#allocation4], 4
      %s39 = int_to_ptr.vmem [resolvable:$true] %s38
      %44 = dma.hbm_to_vmem [thread:$0]  %s37, 256, %s39, [#allocation5], 128, 128, 8
    $region29: #{decoder_lstm_forward.1} parent=1 // pred_fallthru
      _
    // Predicated region
    $region30: #{decoder_lstm_forward.1} parent=1 // pred_check
      _
    $region31: #{decoder_lstm_forward.1} parent=1 // pred_check_branch
      %46 = sbr.rel (0) target = $region33
    $region32: #{decoder_lstm_forward.1} parent=1 // pred_region
      %48 = vsyncadd [#allocation8], 0
      %s49 = sshll.u32 %s7, 4
      %s50 = int_to_ptr.hbm [resolvable:$true] %s49
      %s51 = sshll.u32 [#allocation7], 4
      %s52 = int_to_ptr.vmem [resolvable:$true] %s51
      %57 = dma.hbm_to_vmem [thread:$0]  %s50, 256, %s52, [#allocation8], 128, 128, 8
    $region33: #{decoder_lstm_forward.1} parent=1 // pred_fallthru
      _
    // Predicated region
    $region34: #{decoder_lstm_forward.1} parent=1 // pred_check
      _
    $region35: #{decoder_lstm_forward.1} parent=1 // pred_check_branch
      %59 = sbr.rel (0) target = $region37
    $region36: #{decoder_lstm_forward.1} parent=1 // pred_region
      %61 = dma.done [#allocation5], 256
    $region37: #{decoder_lstm_forward.1} parent=1 // pred_fallthru
      _
    // Predicated region
    $region38: #{decoder_lstm_forward.1} parent=1 // pred_check
      _
    $region39: #{decoder_lstm_forward.1} parent=1 // pred_check_branch
      %63 = sbr.rel (0) target = $region41
    $region40: #{decoder_lstm_forward.1} parent=1 // pred_region
      %65 = dma.done [#allocation8], 256
    $region41: #{decoder_lstm_forward.1} parent=1 // pred_fallthru
      _
    %p67 = scmp.eq.s32.totalorder 0, 0
    // Predicated region
    $region42: #{decoder_lstm_forward.1} parent=1 // pred_check
      %p68 = pneg %p67
    $region43: #{decoder_lstm_forward.1} parent=1 // pred_check_branch
      %70 = sbr.rel (%p68) target = $region45
    $region44: #{decoder_lstm_forward.1} parent=1 // pred_region
      %v71 = vld [vmem:[#allocation4] sm:$0xff]
      %v72 = vld [vmem:[#allocation4 + $0x8] sm:$0xff]
      %vm73 = vcmask 261120
      %74 = vst.msk [vmem:[#allocation2] sm:$0xff] %vm73, %v71
      %75 = vst.msk [vmem:[#allocation2 + $0x8] sm:$0xff] %vm73, %v72
      %v76 = vld [vmem:[#allocation7] sm:$0xff]
      %v77 = vld [vmem:[#allocation7 + $0x8] sm:$0xff]
      %78 = vst.msk [vmem:[#allocation3] sm:$0xff] %vm73, %v76
      %79 = vst.msk [vmem:[#allocation3 + $0x8] sm:$0xff] %vm73, %v77
    $region45: #{decoder_lstm_forward.1} parent=1 // pred_fallthru
      _
    %v80 = vld [vmem:[%s0] sm:$0xff]
    %v81 = vlaneseq
    %v82 = vand.u32 %v81, 127
    %83 = vset.pattern.permute.xlu0 0
    %84 = vperm.xlu0 %83, %v80
    %v85 = vpop.permute.xlu0 %84
    %vm86 = vcmp.eq.s32.totalorder %v82, %v85
    %v87 = vsel %vm86, 1.0, 0.0
    %v88 = vpack.c.bf16 %v87, %v87
    %v89 = vld [vmem:[%s1] sm:$0xf]
    %v90 = vld [vmem:[%s1 + $0x4] sm:$0xf]
    %v91 = vld [vmem:[%s1 + $0x8] sm:$0xf]
    %v92 = vld [vmem:[%s1 + $0xc] sm:$0xf]
    %v93 = vld [vmem:[%s1 + $0x10] sm:$0xf]
    %v94 = vld [vmem:[%s1 + $0x14] sm:$0xf]
    %v95 = vld [vmem:[%s1 + $0x18] sm:$0xf]
    %v96 = vld [vmem:[%s1 + $0x1c] sm:$0xf]
    %v97 = vld [vmem:[%s1 + $0x20] sm:$0xf]
    %v98 = vld [vmem:[%s1 + $0x24] sm:$0xf]
    %v99 = vld [vmem:[%s1 + $0x28] sm:$0xf]
    %v100 = vld [vmem:[%s1 + $0x2c] sm:$0xf]
    %v101 = vld [vmem:[%s1 + $0x30] sm:$0xf]
    %v102 = vld [vmem:[%s1 + $0x34] sm:$0xf]
    %v103 = vld [vmem:[%s1 + $0x38] sm:$0xf]
    %v104 = vld [vmem:[%s1 + $0x3c] sm:$0xf]
    %v121 = vunpack.c.l.b16 %v89
    %v122 = vunpack.c.l.b16 %v90
    %v123 = vunpack.c.l.b16 %v91
    %v124 = vunpack.c.l.b16 %v92
    %v125 = vunpack.c.l.b16 %v93
    %v126 = vunpack.c.l.b16 %v94
    %v127 = vunpack.c.l.b16 %v95
    %v128 = vunpack.c.l.b16 %v96
    %v129 = vunpack.c.l.b16 %v97
    %v130 = vunpack.c.l.b16 %v98
    %v131 = vunpack.c.l.b16 %v99
    %v132 = vunpack.c.l.b16 %v100
    %v133 = vunpack.c.l.b16 %v101
    %v134 = vunpack.c.l.b16 %v102
    %v135 = vunpack.c.l.b16 %v103
    %v136 = vunpack.c.l.b16 %v104
    %v137 = vpack.c.b16 %v122, %v121
    %v138 = vpack.c.b16 %v124, %v123
    %v139 = vpack.c.b16 %v126, %v125
    %v140 = vpack.c.b16 %v128, %v127
    %v141 = vpack.c.b16 %v130, %v129
    %v142 = vpack.c.b16 %v132, %v131
    %v143 = vpack.c.b16 %v134, %v133
    %v144 = vpack.c.b16 %v136, %v135
    %153 = vmatpush.bf16.msra.mxu0 %v144
    %154 = vmatpush.bf16.msra.mxu0 %v143
    %155 = vmatpush.bf16.msra.mxu0 %v142
    %156 = vmatpush.bf16.msra.mxu0 %v141
    %157 = vmatpush.bf16.msra.mxu0 %v140
    %158 = vmatpush.bf16.msra.mxu0 %v139
    %159 = vmatpush.bf16.msra.mxu0 %v138
    %160 = vmatpush.bf16.msra.mxu0 %v137
    %161 = vmatmul.bf16.gmra.mxu0 %v88
    %v162 = vpop.f32.mrf.mxu0
    %v163 = vadd.f32 0.0, %v162
    %v164 = vpop.f32.mrf.mxu0
    %165 = vdwg.mxu0
    %vm166 = vcmp.ge.s32.totalorder %v82, 64
    %vm167 = vcmp.lt.s32.totalorder %v82, 96
    %vm168 = vmand %vm166, %vm167
    %v169 = vld [vmem:[#allocation2] sm:$0xff]
    %v170 = vld [vmem:[#allocation3] sm:$0xff]
    %172 = vrot.lane.b32.xlu0 %v169, 32
    %v173 = vpop.permute.xlu0 %172
    %vm175 = vcmask 261120
    %v176 = vsel %vm175, %v163, %v173
    %v177 = vpack.c.bf16 %v176, %v176
    %v178 = vld [vmem:[%s2] sm:$0xf]
    %v179 = vld [vmem:[%s2 + $0x4] sm:$0xf]
    %v180 = vld [vmem:[%s2 + $0x8] sm:$0xf]
    %v181 = vld [vmem:[%s2 + $0xc] sm:$0xf]
    %v182 = vld [vmem:[%s2 + $0x10] sm:$0xf]
    %v183 = vld [vmem:[%s2 + $0x14] sm:$0xf]
    %v184 = vld [vmem:[%s2 + $0x18] sm:$0xf]
    %v185 = vld [vmem:[%s2 + $0x1c] sm:$0xf]
    %v186 = vld [vmem:[%s3] sm:$0x1]
    %v188 = vperm.slane %v186, 0
    %v198 = vunpack.c.l.b16 %v178
    %v199 = vunpack.c.l.b16 %v179
    %v200 = vunpack.c.l.b16 %v180
    %v201 = vunpack.c.l.b16 %v181
    %v202 = vunpack.c.l.b16 %v182
    %v203 = vunpack.c.l.b16 %v183
    %v204 = vunpack.c.l.b16 %v184
    %v205 = vunpack.c.l.b16 %v185
    %v206 = vpack.c.b16 %v199, %v198
    %v207 = vpack.c.b16 %v201, %v200
    %v208 = vpack.c.b16 %v203, %v202
    %v209 = vpack.c.b16 %v205, %v204
    %vm214 = vcmask 523264
    %v216 = vsel %vm214, %v177, 0
    %218 = vmatpush.bf16.msra.mxu0 0
    %219 = vmatpush.bf16.msra.mxu0 0
    %220 = vmatpush.bf16.msra.mxu0 0
    %221 = vmatpush.bf16.msra.mxu0 0
    %222 = vmatpush.bf16.msra.mxu0 %v209
    %223 = vmatpush.bf16.msra.mxu0 %v208
    %224 = vmatpush.bf16.msra.mxu0 %v207
    %225 = vmatpush.bf16.msra.mxu0 %v206
    %226 = vmatmul.bf16.gmra.mxu0 %v216
    %v227 = vpop.f32.mrf.mxu0
    %v228 = vadd.f32 %v188, %v227
    %v229 = vpop.f32.mrf.mxu0
    %230 = vdwg.mxu0
    %v231 = vxor.u32 %v228, 2147483648
    %v232 = vmul.f32 %v231, 1.442695
    %v233 = vpow.pop %v232
    %v234 = vadd.f32 %v233, 1.0
    %v235 = vrcp.pop %v234
    %v236 = vmul.f32 %v234, %v235
    %v237 = vsub.f32 1.0, %v236
    %v238 = vmul.f32 %v235, %v237
    %v239 = vadd.f32 %v235, %v238
    %vm240 = vweird.f32 %v234
    %vm241 = vweird.f32 %v235
    %vm242 = vmor %vm240, %vm241
    %v243 = vsel %vm242, %v235, %v239
    %v244 = vand.u32 2147483647, %v234
    %vm245 = vcmp.eq.f32.partialorder %v244, 8.507059e+37
    %v246 = vand.u32 %v234, 2147483648
    %v247 = vor.u32 1.1754944e-38, %v246
    %v248 = vsel %vm245, %v247, %v243
    %v249 = vmul.f32 1.0, %v248
    %v250 = vmul.f32 %v249, 2.0
    %v251 = vsub.f32 %v250, 1.0
    %v252 = vsel %vm168, %v251, %v249
    %254 = vrot.lane.b32.xlu0 %v170, 32
    %v255 = vpop.permute.xlu0 %254
    %v257 = vmul.f32 %v252, %v255
    %259 = vrot.lane.b32.xlu0 %v252, 64
    %v260 = vpop.permute.xlu0 %259
    %v262 = vmul.f32 %v252, %v260
    %264 = vrot.lane.b32.xlu0 %v262, 32
    %v265 = vpop.permute.xlu0 %264
    %v267 = vadd.f32 %v257, %v265
    %v268 = vtanh.pop %v267
    %270 = vrot.lane.b32.xlu0 %v268, 64
    %v271 = vpop.permute.xlu0 %270
    %v273 = vmul.f32 %v252, %v271
    %275 = vrot.lane.b32.xlu0 %v273, 32
    %v276 = vpop.permute.xlu0 %275
    %278 = vst.msk [vmem:[#allocation2] sm:$0xff] %vm175, %v276
    %280 = vrot.lane.b32.xlu0 %v267, 96
    %v281 = vpop.permute.xlu0 %280
    %283 = vst.msk [vmem:[#allocation3] sm:$0xff] %vm175, %v281
    %s284 = scalar_lea.vmem [#allocation2], 8
    %v285 = vld [vmem:[%s284] sm:$0xff]
    %s286 = scalar_lea.vmem [#allocation3], 8
    %v287 = vld [vmem:[%s286] sm:$0xff]
    %289 = vrot.lane.b32.xlu0 %v285, 32
    %v290 = vpop.permute.xlu0 %289
    %v292 = vsel %vm175, %v276, %v290
    %v293 = vpack.c.bf16 %v292, %v292
    %s294 = scalar_lea.vmem %s2, 32
    %v295 = vld [vmem:[%s294] sm:$0xf]
    %v296 = vld [vmem:[%s294 + $0x4] sm:$0xf]
    %v297 = vld [vmem:[%s294 + $0x8] sm:$0xf]
    %v298 = vld [vmem:[%s294 + $0xc] sm:$0xf]
    %v299 = vld [vmem:[%s294 + $0x10] sm:$0xf]
    %v300 = vld [vmem:[%s294 + $0x14] sm:$0xf]
    %v301 = vld [vmem:[%s294 + $0x18] sm:$0xf]
    %v302 = vld [vmem:[%s294 + $0x1c] sm:$0xf]
    %s303 = scalar_lea.vmem %s3, 1
    %v304 = vld [vmem:[%s303] sm:$0x1]
    %v306 = vperm.slane %v304, 0
    %v316 = vunpack.c.l.b16 %v295
    %v317 = vunpack.c.l.b16 %v296
    %v318 = vunpack.c.l.b16 %v297
    %v319 = vunpack.c.l.b16 %v298
    %v320 = vunpack.c.l.b16 %v299
    %v321 = vunpack.c.l.b16 %v300
    %v322 = vunpack.c.l.b16 %v301
    %v323 = vunpack.c.l.b16 %v302
    %v324 = vpack.c.b16 %v317, %v316
    %v325 = vpack.c.b16 %v319, %v318
    %v326 = vpack.c.b16 %v321, %v320
    %v327 = vpack.c.b16 %v323, %v322
    %v333 = vsel %vm214, %v293, 0
    %335 = vmatpush.bf16.msra.mxu0 0
    %336 = vmatpush.bf16.msra.mxu0 0
    %337 = vmatpush.bf16.msra.mxu0 0
    %338 = vmatpush.bf16.msra.mxu0 0
    %339 = vmatpush.bf16.msra.mxu0 %v327
    %340 = vmatpush.bf16.msra.mxu0 %v326
    %341 = vmatpush.bf16.msra.mxu0 %v325
    %342 = vmatpush.bf16.msra.mxu0 %v324
    %343 = vmatmul.bf16.gmra.mxu0 %v333
    %v344 = vpop.f32.mrf.mxu0
    %v345 = vadd.f32 %v306, %v344
    %v346 = vpop.f32.mrf.mxu0
    %347 = vdwg.mxu0
    %v348 = vxor.u32 %v345, 2147483648
    %v349 = vmul.f32 %v348, 1.442695
    %v350 = vpow.pop %v349
    %v351 = vadd.f32 %v350, 1.0
    %v352 = vrcp.pop %v351
    %v353 = vmul.f32 %v351, %v352
    %v354 = vsub.f32 1.0, %v353
    %v355 = vmul.f32 %v352, %v354
    %v356 = vadd.f32 %v352, %v355
    %vm357 = vweird.f32 %v351
    %vm358 = vweird.f32 %v352
    %vm359 = vmor %vm357, %vm358
    %v360 = vsel %vm359, %v352, %v356
    %v361 = vand.u32 2147483647, %v351
    %vm362 = vcmp.eq.f32.partialorder %v361, 8.507059e+37
    %v363 = vand.u32 %v351, 2147483648
    %v364 = vor.u32 1.1754944e-38, %v363
    %v365 = vsel %vm362, %v364, %v360
    %v366 = vmul.f32 1.0, %v365
    %v367 = vmul.f32 %v366, 2.0
    %v368 = vsub.f32 %v367, 1.0
    %v369 = vsel %vm168, %v368, %v366
    %371 = vrot.lane.b32.xlu0 %v287, 32
    %v372 = vpop.permute.xlu0 %371
    %v374 = vmul.f32 %v369, %v372
    %376 = vrot.lane.b32.xlu0 %v369, 64
    %v377 = vpop.permute.xlu0 %376
    %v379 = vmul.f32 %v369, %v377
    %381 = vrot.lane.b32.xlu0 %v379, 32
    %v382 = vpop.permute.xlu0 %381
    %v384 = vadd.f32 %v374, %v382
    %v385 = vtanh.pop %v384
    %387 = vrot.lane.b32.xlu0 %v385, 64
    %v388 = vpop.permute.xlu0 %387
    %v390 = vmul.f32 %v369, %v388
    %392 = vrot.lane.b32.xlu0 %v390, 32
    %v393 = vpop.permute.xlu0 %392
    %395 = vst.msk [vmem:[%s284] sm:$0xff] %vm175, %v393
    %397 = vrot.lane.b32.xlu0 %v384, 96
    %v398 = vpop.permute.xlu0 %397
    %400 = vst.msk [vmem:[%s286] sm:$0xff] %vm175, %v398
    %v401 = vpack.c.bf16 %v390, %v390
    %v402 = vld [vmem:[%s4] sm:$0xf]
    %v403 = vld [vmem:[%s4 + $0x4] sm:$0xf]
    %v404 = vld [vmem:[%s4 + $0x8] sm:$0xf]
    %v405 = vld [vmem:[%s4 + $0xc] sm:$0xf]
    %v406 = vld [vmem:[%s5] sm:$0x1]
    %v408 = vperm.slane %v406, 0
    %411 = vrot.lane.b32.xlu0 %v401, 32
    %v412 = vpop.permute.xlu0 %411
    %v417 = vunpack.c.l.b16 %v402
    %v418 = vunpack.c.l.b16 %v403
    %v419 = vunpack.c.l.b16 %v404
    %v420 = vunpack.c.l.b16 %v405
    %v421 = vpack.c.b16 %v418, %v417
    %v422 = vpack.c.b16 %v420, %v419
    %v426 = vsel %vm175, %v412, 0
    %428 = vmatpush.bf16.msra.mxu0 0
    %429 = vmatpush.bf16.msra.mxu0 0
    %430 = vmatpush.bf16.msra.mxu0 0
    %431 = vmatpush.bf16.msra.mxu0 0
    %432 = vmatpush.bf16.msra.mxu0 0
    %433 = vmatpush.bf16.msra.mxu0 0
    %434 = vmatpush.bf16.msra.mxu0 %v422
    %435 = vmatpush.bf16.msra.mxu0 %v421
    %436 = vmatmul.bf16.gmra.mxu0 %v426
    %v437 = vpop.f32.mrf.mxu0
    %v438 = vadd.f32 %v408, %v437
    %v439 = vpop.f32.mrf.mxu0
    %440 = vdwg.mxu0
    %441 = vst [vmem:[%s8] sm:$0xff] %v438
    // Predicated region
    $region46: #{decoder_lstm_forward.1} parent=1 // pred_check
      %p442 = pneg %p67
    $region47: #{decoder_lstm_forward.1} parent=1 // pred_check_branch
      %444 = sbr.rel (%p442) target = $region49
    $region48: #{decoder_lstm_forward.1} parent=1 // pred_region
      %v445 = vld [vmem:[#allocation2] sm:$0xff]
      %v446 = vld [vmem:[#allocation2 + $0x8] sm:$0xff]
      %447 = vst.msk [vmem:[#allocation9] sm:$0xff] %vm175, %v445
      %448 = vst.msk [vmem:[#allocation9 + $0x8] sm:$0xff] %vm175, %v446
      %v449 = vld [vmem:[#allocation3] sm:$0xff]
      %v450 = vld [vmem:[#allocation3 + $0x8] sm:$0xff]
      %451 = vst.msk [vmem:[#allocation10] sm:$0xff] %vm175, %v449
      %452 = vst.msk [vmem:[#allocation10 + $0x8] sm:$0xff] %vm175, %v450
    $region49: #{decoder_lstm_forward.1} parent=1 // pred_fallthru
      _
    // Predicated region
    $region50: #{decoder_lstm_forward.1} parent=1 // pred_check
      _
    $region51: #{decoder_lstm_forward.1} parent=1 // pred_check_branch
      %454 = sbr.rel (0) target = $region53
    $region52: #{decoder_lstm_forward.1} parent=1 // pred_region
      _
    $region53: #{decoder_lstm_forward.1} parent=1 // pred_fallthru
      _
    // Predicated region
    $region54: #{decoder_lstm_forward.1} parent=1 // pred_check
      _
    $region55: #{decoder_lstm_forward.1} parent=1 // pred_check_branch
      %456 = sbr.rel (0) target = $region57
    $region56: #{decoder_lstm_forward.1} parent=1 // pred_region
      %458 = vsyncadd [#allocation6], 0
      %s459 = sshll.u32 [#allocation9], 4
      %s460 = int_to_ptr.vmem [resolvable:$true] %s459
      %s461 = sshll.u32 %s9, 4
      %s462 = int_to_ptr.hbm [resolvable:$true] %s461
      %467 = dma.vmem_to_hbm [thread:$0]  %s460, 256, %s462, [#allocation6], 128, 128, 8
    $region57: #{decoder_lstm_forward.1} parent=1 // pred_fallthru
      _
    // Predicated region
    $region58: #{decoder_lstm_forward.1} parent=1 // pred_check
      _
    $region59: #{decoder_lstm_forward.1} parent=1 // pred_check_branch
      %469 = sbr.rel (0) target = $region61
    $region60: #{decoder_lstm_forward.1} parent=1 // pred_region
      %471 = vsyncadd [#allocation11], 0
      %s472 = sshll.u32 [#allocation10], 4
      %s473 = int_to_ptr.vmem [resolvable:$true] %s472
      %s474 = sshll.u32 %s10, 4
      %s475 = int_to_ptr.hbm [resolvable:$true] %s474
      %480 = dma.vmem_to_hbm [thread:$0]  %s473, 256, %s475, [#allocation11], 128, 128, 8
    $region61: #{decoder_lstm_forward.1} parent=1 // pred_fallthru
      _
    // Predicated region
    $region62: #{decoder_lstm_forward.1} parent=1 // pred_check
      _
    $region63: #{decoder_lstm_forward.1} parent=1 // pred_check_branch
      %482 = sbr.rel (0) target = $region65
    $region64: #{decoder_lstm_forward.1} parent=1 // pred_region
      _
    $region65: #{decoder_lstm_forward.1} parent=1 // pred_fallthru
      _
    // Predicated region
    $region66: #{decoder_lstm_forward.1} parent=1 // pred_check
      _
    $region67: #{decoder_lstm_forward.1} parent=1 // pred_check_branch
      %484 = sbr.rel (0) target = $region69
    $region68: #{decoder_lstm_forward.1} parent=1 // pred_region
      %486 = dma.done [#allocation6], 256
    $region69: #{decoder_lstm_forward.1} parent=1 // pred_fallthru
      _
    // Predicated region
    $region70: #{decoder_lstm_forward.1} parent=1 // pred_check
      _
    $region71: #{decoder_lstm_forward.1} parent=1 // pred_check_branch
      %488 = sbr.rel (0) target = $region73
    $region72: #{decoder_lstm_forward.1} parent=1 // pred_region
      %490 = dma.done [#allocation11], 256
    $region73: #{decoder_lstm_forward.1} parent=1 // pred_fallthru
      _
    %491 = vsyncpa [#allocation5], 1
    %492 = vsyncpa [#allocation8], 1
    %493 = vsyncpa [#allocation6], 1
    %494 = vsyncpa [#allocation11], 1

</llo_original>
